<compile_context>
chip_gen: v7x
topology: tpu7x:2x2x1
jax: 0.10.0
libtpu: 0.0.40
codegen_flags: <defaults>
</compile_context>

<pallas_src>
import functools

import jax
import jax.numpy as jnp
from jax.experimental import pallas as pl
from jax.experimental.pallas import tpu as pltpu  # noqa: F401  (kept for TPU memory-space use if needed)


def _attn_dropout_kernel(*refs, inv_scale: float, dropout_p: float):
    """Single invocation: the whole (B,Lq,D)/(B,Lk,D)/(B,Lk,Dv) problem lives in VMEM."""
    use_dropout = 0.0 < dropout_p < 1.0
    if use_dropout:
        q_ref, k_ref, v_ref, bits_ref, o_ref = refs
    else:
        q_ref, k_ref, v_ref, o_ref = refs

    q = q_ref[...]          # (B, Lq, D)  f32
    k = k_ref[...]          # (B, Lk, D)  f32
    v = v_ref[...]          # (B, Lk, Dv) f32

    # Q @ K^T via a last-axis contraction (no materialized transpose of K).
    s = jnp.einsum("bqd,bkd->bqk", q, k, preferred_element_type=jnp.float32)
    s = s * jnp.float32(inv_scale)

    # Numerically-stable softmax numerator; normalization is deferred past P@V.
    m = jnp.max(s, axis=-1, keepdims=True)
    e = jnp.exp(s - m)
    denom = jnp.sum(e, axis=-1, keepdims=True)          # (B, Lq, 1)

    if use_dropout:
        # keep w.p. (1-p): integer threshold test directly on the raw uint32 bits.
        threshold = min(int(round(dropout_p * 4294967296.0)), 4294967295)
        keep = bits_ref[...] >= jnp.uint32(threshold)
        e = jnp.where(keep, e, jnp.float32(0.0))
        # Fold softmax 1/denom and dropout 1/(1-p) into one per-row factor.
        row_scale = jnp.float32(1.0 / (1.0 - dropout_p)) / denom
    else:
        row_scale = jnp.float32(1.0) / denom

    out = jnp.einsum("bqk,bkd->bqd", e, v, preferred_element_type=jnp.float32)
    o_ref[...] = (out * row_scale).astype(o_ref.dtype)  # (B, Lq, Dv)


def attention_dropout(query, key, value, scale_factor, dropout_p, *, rng_key=None):
    B, Lq, D = query.shape
    Bk, Lk, Dk = key.shape
    Bv, Lkv, Dv = value.shape
    assert B == Bk == Bv and D == Dk and Lk == Lkv, "inconsistent attention shapes"

    dropout_p = float(dropout_p)
    if dropout_p >= 1.0:
        # F.dropout(p=1) zeroes everything; avoid the 1/(1-p)=inf path.
        return jnp.zeros((B, Lq, Dv), dtype=query.dtype)

    use_dropout = dropout_p > 0.0
    kernel = functools.partial(
        _attn_dropout_kernel,
        inv_scale=1.0 / float(scale_factor),
        dropout_p=dropout_p,
    )

    inputs = [query, key, value]
    in_specs = [
        pl.BlockSpec((B, Lq, D), lambda: (0, 0, 0)),
        pl.BlockSpec((B, Lk, D), lambda: (0, 0, 0)),
        pl.BlockSpec((B, Lk, Dv), lambda: (0, 0, 0)),
    ]
    if use_dropout:
        if rng_key is None:
            rng_key = jax.random.PRNGKey(0)
        # Host-side uniform uint32 bits for the dropout mask (one per logit).
        # TODO(synk): does not bit-match torch's dropout RNG; matches in distribution.
        bits = jax.random.bits(rng_key, (B, Lq, Lk), dtype=jnp.uint32)
        inputs.append(bits)
        in_specs.append(pl.BlockSpec((B, Lq, Lk), lambda: (0, 0, 0)))

    return pl.pallas_call(
        kernel,
        out_shape=jax.ShapeDtypeStruct((B, Lq, Dv), query.dtype),
        in_specs=in_specs,
        out_specs=pl.BlockSpec((B, Lq, Dv), lambda: (0, 0, 0)),
    )(*inputs)


if __name__ == "__main__":
    B, Lq, Lk, D, Dv = 2, 4, 8, 8, 4
    scale_factor = 4.0
    dropout_p = 0.4

    k0 = jax.random.PRNGKey(0)
    kq, kk, kv, kd = jax.random.split(k0, 4)
    query = jax.random.normal(kq, (B, Lq, D), dtype=jnp.float32)
    key = jax.random.normal(kk, (B, Lk, D), dtype=jnp.float32)
    value = jax.random.normal(kv, (B, Lk, Dv), dtype=jnp.float32)

    # The spec's nn.MultiheadAttention(8, 4) is constructed in __init__ but never used
    # in forward(), so its parameters are intentionally omitted here.

    out = attention_dropout(query, key, value, scale_factor, dropout_p, rng_key=kd)
    jax.block_until_ready(out)
    assert out.shape == (B, Lq, Dv)
    assert bool(jnp.all(jnp.isfinite(out)))
    print("KERNEL_OK")
</pallas_src>

<mosaic_0001>
module attributes {stable_mosaic.version = 11 : i64} {
  func.func @_attn_dropout_kernel(%arg0: memref<2x4x8xf32, #tpu.memory_space<vmem>>, %arg1: memref<2x8x8xf32, #tpu.memory_space<vmem>>, %arg2: memref<2x8x4xf32, #tpu.memory_space<vmem>>, %arg3: memref<2x4x8xi32, #tpu.memory_space<vmem>>, %arg4: memref<2x4x4xf32, #tpu.memory_space<vmem>>) attributes {dimension_semantics = [], scalar_prefetch = 0 : i64, scratch_operands = 0 : i64, tpu.core_type = #tpu.core_type<tc>} {
    %c0 = arith.constant 0 : index
    %c0_0 = arith.constant 0 : index
    %c0_1 = arith.constant 0 : index
    %0 = vector.load %arg0[%c0, %c0_0, %c0_1] : memref<2x4x8xf32, #tpu.memory_space<vmem>>, vector<2x4x8xf32>
    %c0_2 = arith.constant 0 : index
    %c0_3 = arith.constant 0 : index
    %c0_4 = arith.constant 0 : index
    %1 = vector.load %arg1[%c0_2, %c0_3, %c0_4] : memref<2x8x8xf32, #tpu.memory_space<vmem>>, vector<2x8x8xf32>
    %c0_5 = arith.constant 0 : index
    %c0_6 = arith.constant 0 : index
    %c0_7 = arith.constant 0 : index
    %2 = vector.load %arg2[%c0_5, %c0_6, %c0_7] : memref<2x8x4xf32, #tpu.memory_space<vmem>>, vector<2x8x4xf32>
    "tpu.trace_start"() <{level = 10 : i32, message = "bqd,bkd->bqk"}> : () -> ()
    %cst = arith.constant dense<0.000000e+00> : vector<2x4x8xf32>
    %3 = tpu.matmul %0, %1, %cst {dimension_numbers = #tpu.dot_dimension_numbers<[2], [2], [1], [1], [0, 0, 0, 1, 1, 1], [0], [0]>} : vector<2x4x8xf32>, vector<2x8x8xf32>, vector<2x4x8xf32> -> vector<2x4x8xf32>
    "tpu.trace_stop"() : () -> ()
    %cst_8 = arith.constant 2.500000e-01 : f32
    %4 = vector.broadcast %cst_8 : f32 to vector<2x4x8xf32>
    %5 = arith.mulf %3, %4 : vector<2x4x8xf32>
    %cst_9 = arith.constant dense<0xFF800000> : vector<2x4xf32>
    %6 = vector.multi_reduction <maximumf>, %5, %cst_9 [2] : vector<2x4x8xf32> to vector<2x4xf32>
    %7 = vector.shape_cast %6 : vector<2x4xf32> to vector<2x4x1xf32>
    %8 = vector.broadcast %7 : vector<2x4x1xf32> to vector<2x4x8xf32>
    %9 = arith.subf %5, %8 : vector<2x4x8xf32>
    %10 = math.exp %9 : vector<2x4x8xf32>
    %cst_10 = arith.constant dense<0.000000e+00> : vector<2x4xf32>
    %11 = vector.multi_reduction <add>, %10, %cst_10 [2] : vector<2x4x8xf32> to vector<2x4xf32>
    %12 = vector.shape_cast %11 : vector<2x4xf32> to vector<2x4x1xf32>
    %c0_11 = arith.constant 0 : index
    %c0_12 = arith.constant 0 : index
    %c0_13 = arith.constant 0 : index
    %13 = vector.load %arg3[%c0_11, %c0_12, %c0_13] : memref<2x4x8xi32, #tpu.memory_space<vmem>>, vector<2x4x8xi32>
    %c1717986918_i32 = arith.constant 1717986918 : i32
    %14 = vector.broadcast %c1717986918_i32 : i32 to vector<2x4x8xi32>
    %15 = arith.cmpi uge, %13, %14 : vector<2x4x8xi32>
    %cst_14 = arith.constant 0.000000e+00 : f32
    %16 = vector.broadcast %cst_14 : f32 to vector<2x4x8xf32>
    %17 = arith.select %15, %10, %16 : vector<2x4x8xi1>, vector<2x4x8xf32>
    %cst_15 = arith.constant 1.66666663 : f32
    %18 = vector.broadcast %cst_15 : f32 to vector<2x4x1xf32>
    %19 = arith.divf %18, %12 : vector<2x4x1xf32>
    "tpu.trace_start"() <{level = 10 : i32, message = "bqk,bkd->bqd"}> : () -> ()
    %cst_16 = arith.constant dense<0.000000e+00> : vector<2x4x4xf32>
    %20 = tpu.matmul %17, %2, %cst_16 {dimension_numbers = #tpu.dot_dimension_numbers<[2], [1], [1], [2], [0, 0, 0, 1, 1, 2], [0], [0]>} : vector<2x4x8xf32>, vector<2x8x4xf32>, vector<2x4x4xf32> -> vector<2x4x4xf32>
    "tpu.trace_stop"() : () -> ()
    %21 = vector.broadcast %19 : vector<2x4x1xf32> to vector<2x4x4xf32>
    %22 = arith.mulf %20, %21 : vector<2x4x4xf32>
    %c0_17 = arith.constant 0 : index
    %c0_18 = arith.constant 0 : index
    %c0_19 = arith.constant 0 : index
    %23 = vector.load %arg4[%c0_17, %c0_18, %c0_19] : memref<2x4x4xf32, #tpu.memory_space<vmem>>, vector<2x4x4xf32>
    tpu.vector_store %arg4[%c0_17, %c0_18, %c0_19], %22 {strides = array<i32>} : memref<2x4x4xf32, #tpu.memory_space<vmem>>, vector<2x4x4xf32>,
    return
  }
}

</mosaic_0001>

<llo_original>
// kernel: tpu_custom_call.1
$region0: #{tpu_custom_call.1}
  #allocation0 [shape = 'u32[]', space=smem, size = 0x4, offset = 0x4, fixed_abs, tag = 'smem constant byte address 0x4 - core index']
  #allocation1 [shape = 'u32[144,128]{1,0:T(1,128)}', space=vmem, size = 0x12000, scoped, tag = 'internal scratch']
  %s0 = inlined_call_operand.vmem [shape: f32[2,4,8], index: 0, kind: input, shape index: {}]
  %s1 = inlined_call_operand.vmem [shape: f32[2,8,8], index: 1, kind: input, shape index: {}]
  %s2 = inlined_call_operand.vmem [shape: f32[2,8,4], index: 2, kind: input, shape index: {}]
  %s3 = inlined_call_operand.vmem [shape: u32[2,4,8], index: 3, kind: input, shape index: {}]
  %s4 = inlined_call_operand.hbm [shape: f32[2,4,4], index: 4, kind: output, shape index: {}]
  %s5 = sld [smem:[#allocation0]]
  $region26: #{tpu_custom_call.1} parent=0
    _
  %s7 = ssub.s32 1, %s5
  %s8 = scalar_select 0, %s7, %s5
  $region1: #{tpu_custom_call.1} parent=0
    #allocation2 [shape = 'u8[4096]{0}', space=vmem, size = 0x1000, scoped, tag = 'output window, operand 0, single buffered']
    #allocation3 [shape = 's32[1]{0}', space=sflag, size = 0x4, scoped, tag = 'scoped memory for tpu_custom_call.1']
    %9 = vsyncpa [#allocation3], 0
    // Predicated region
    $region2: #{tpu_custom_call.1} parent=1 // pred_check
      _
    $region3: #{tpu_custom_call.1} parent=1 // pred_check_branch
      %11 = sbr.rel (0) target = $region5
    $region4: #{tpu_custom_call.1} parent=1 // pred_region
      _
    $region5: #{tpu_custom_call.1} parent=1 // pred_fallthru
      _
    // Predicated region
    $region6: #{tpu_custom_call.1} parent=1 // pred_check
      _
    $region7: #{tpu_custom_call.1} parent=1 // pred_check_branch
      %13 = sbr.rel (0) target = $region9
    $region8: #{tpu_custom_call.1} parent=1 // pred_region
      _
    $region9: #{tpu_custom_call.1} parent=1 // pred_fallthru
      _
    // Predicated region
    $region10: #{tpu_custom_call.1} parent=1 // pred_check
      _
    $region11: #{tpu_custom_call.1} parent=1 // pred_check_branch
      %15 = sbr.rel (0) target = $region13
    $region12: #{tpu_custom_call.1} parent=1 // pred_region
      _
    $region13: #{tpu_custom_call.1} parent=1 // pred_fallthru
      _
    // Predicated region
    $region14: #{tpu_custom_call.1} parent=1 // pred_check
      _
    $region15: #{tpu_custom_call.1} parent=1 // pred_check_branch
      %17 = sbr.rel (0) target = $region17
    $region16: #{tpu_custom_call.1} parent=1 // pred_region
      _
    $region17: #{tpu_custom_call.1} parent=1 // pred_fallthru
      _
    %v18 = vld [vmem:[%s0] sm:$0xf]
    %v19 = vld [vmem:[%s0 + $0x4] sm:$0xf]
    %v20 = vld [vmem:[%s1] sm:$0xff]
    %v21 = vld [vmem:[%s1 + $0x8] sm:$0xff]
    %v22 = vld [vmem:[%s2] sm:$0xff]
    %v23 = vld [vmem:[%s2 + $0x8] sm:$0xff]
    %vm24 = vcmask 64512
    %v26 = vsel %vm24, %v18, 0
    %v29 = vsel %vm24, %v20, 0
    %31 = vmatprep.subr.mxu0 0.0
    %32 = vmatpush1.xpose.msra.mxu0 %v29
    %33 = vmatprep.subr.mxu0 0.0
    %34 = vmatpush1.xpose.msra.mxu0 0.0
    %35 = vmatprep.subr.mxu0 0.0
    %36 = vmatpush1.xpose.msra.mxu0 0.0
    %37 = vmatprep.subr.mxu0 0.0
    %38 = vmatpush1.xpose.msra.mxu0 0.0
    %39 = vmatprep.subr.mxu0 0.0
    %40 = vmatpush1.xpose.msra.mxu0 0.0
    %41 = vmatprep.subr.mxu0 0.0
    %42 = vmatpush1.xpose.msra.mxu0 0.0
    %43 = vmatprep.subr.mxu0 0.0
    %44 = vmatpush1.xpose.msra.mxu0 0.0
    %45 = vmatprep.subr.mxu0 0.0
    %46 = vmatpush1.xpose.msra.mxu0 0.0
    %47 = vmatprep.subr.mxu0 0.0
    %48 = vmatpush1.xpose.msra.mxu0 0.0
    %49 = vmatprep.subr.mxu0 0.0
    %50 = vmatpush1.xpose.msra.mxu0 0.0
    %51 = vmatprep.subr.mxu0 0.0
    %52 = vmatpush1.xpose.msra.mxu0 0.0
    %53 = vmatprep.subr.mxu0 0.0
    %54 = vmatpush1.xpose.msra.mxu0 0.0
    %55 = vmatprep.subr.mxu0 0.0
    %56 = vmatpush1.xpose.msra.mxu0 0.0
    %57 = vmatprep.subr.mxu0 0.0
    %58 = vmatpush1.xpose.msra.mxu0 0.0
    %59 = vmatprep.subr.mxu0 0.0
    %60 = vmatpush1.xpose.msra.mxu0 0.0
    %61 = vmatprep.subr.mxu0 0.0
    %62 = vmatpush1.xpose.msra.mxu0 0.0
    %63 = vmatprep.subr.mxu0 0.0
    %64 = vmatpush1.xpose.msra.mxu0 0.0
    %65 = vmatprep.subr.mxu0 0.0
    %66 = vmatpush1.xpose.msra.mxu0 0.0
    %67 = vmatprep.subr.mxu0 0.0
    %68 = vmatpush1.xpose.msra.mxu0 0.0
    %69 = vmatprep.subr.mxu0 0.0
    %70 = vmatpush1.xpose.msra.mxu0 0.0
    %71 = vmatprep.subr.mxu0 0.0
    %72 = vmatpush1.xpose.msra.mxu0 0.0
    %73 = vmatprep.subr.mxu0 0.0
    %74 = vmatpush1.xpose.msra.mxu0 0.0
    %75 = vmatprep.subr.mxu0 0.0
    %76 = vmatpush1.xpose.msra.mxu0 0.0
    %77 = vmatprep.subr.mxu0 0.0
    %78 = vmatpush1.xpose.msra.mxu0 0.0
    %79 = vmatprep.subr.mxu0 0.0
    %80 = vmatpush1.xpose.msra.mxu0 0.0
    %81 = vmatprep.subr.mxu0 0.0
    %82 = vmatpush1.xpose.msra.mxu0 0.0
    %83 = vmatprep.subr.mxu0 0.0
    %84 = vmatpush1.xpose.msra.mxu0 0.0
    %85 = vmatprep.subr.mxu0 0.0
    %86 = vmatpush1.xpose.msra.mxu0 0.0
    %87 = vmatprep.subr.mxu0 0.0
    %88 = vmatpush1.xpose.msra.mxu0 0.0
    %89 = vmatprep.subr.mxu0 0.0
    %90 = vmatpush1.xpose.msra.mxu0 0.0
    %91 = vmatprep.subr.mxu0 0.0
    %92 = vmatpush1.xpose.msra.mxu0 0.0
    %93 = vmatprep.subr.mxu0 0.0
    %94 = vmatpush1.xpose.msra.mxu0 0.0
    %95 = vmatprep.mubr.f32.mxu0 0.0
    %96 = vmatmul.mubr.f32.gmra.mrb[0].mxu0 %v26
    %v97 = vpop.f32.mrb[0].mxu0
    %v98 = vadd.f32 0.0, %v97
    %v99 = vpop.f32.mrb[0].mxu0
    %100 = vdwg.mxu0
    %v102 = vsel %vm24, %v19, 0
    %v105 = vsel %vm24, %v21, 0
    %107 = vmatprep.subr.mxu0 0.0
    %108 = vmatpush1.xpose.msra.mxu0 %v105
    %109 = vmatprep.subr.mxu0 0.0
    %110 = vmatpush1.xpose.msra.mxu0 0.0
    %111 = vmatprep.subr.mxu0 0.0
    %112 = vmatpush1.xpose.msra.mxu0 0.0
    %113 = vmatprep.subr.mxu0 0.0
    %114 = vmatpush1.xpose.msra.mxu0 0.0
    %115 = vmatprep.subr.mxu0 0.0
    %116 = vmatpush1.xpose.msra.mxu0 0.0
    %117 = vmatprep.subr.mxu0 0.0
    %118 = vmatpush1.xpose.msra.mxu0 0.0
    %119 = vmatprep.subr.mxu0 0.0
    %120 = vmatpush1.xpose.msra.mxu0 0.0
    %121 = vmatprep.subr.mxu0 0.0
    %122 = vmatpush1.xpose.msra.mxu0 0.0
    %123 = vmatprep.subr.mxu0 0.0
    %124 = vmatpush1.xpose.msra.mxu0 0.0
    %125 = vmatprep.subr.mxu0 0.0
    %126 = vmatpush1.xpose.msra.mxu0 0.0
    %127 = vmatprep.subr.mxu0 0.0
    %128 = vmatpush1.xpose.msra.mxu0 0.0
    %129 = vmatprep.subr.mxu0 0.0
    %130 = vmatpush1.xpose.msra.mxu0 0.0
    %131 = vmatprep.subr.mxu0 0.0
    %132 = vmatpush1.xpose.msra.mxu0 0.0
    %133 = vmatprep.subr.mxu0 0.0
    %134 = vmatpush1.xpose.msra.mxu0 0.0
    %135 = vmatprep.subr.mxu0 0.0
    %136 = vmatpush1.xpose.msra.mxu0 0.0
    %137 = vmatprep.subr.mxu0 0.0
    %138 = vmatpush1.xpose.msra.mxu0 0.0
    %139 = vmatprep.subr.mxu0 0.0
    %140 = vmatpush1.xpose.msra.mxu0 0.0
    %141 = vmatprep.subr.mxu0 0.0
    %142 = vmatpush1.xpose.msra.mxu0 0.0
    %143 = vmatprep.subr.mxu0 0.0
    %144 = vmatpush1.xpose.msra.mxu0 0.0
    %145 = vmatprep.subr.mxu0 0.0
    %146 = vmatpush1.xpose.msra.mxu0 0.0
    %147 = vmatprep.subr.mxu0 0.0
    %148 = vmatpush1.xpose.msra.mxu0 0.0
    %149 = vmatprep.subr.mxu0 0.0
    %150 = vmatpush1.xpose.msra.mxu0 0.0
    %151 = vmatprep.subr.mxu0 0.0
    %152 = vmatpush1.xpose.msra.mxu0 0.0
    %153 = vmatprep.subr.mxu0 0.0
    %154 = vmatpush1.xpose.msra.mxu0 0.0
    %155 = vmatprep.subr.mxu0 0.0
    %156 = vmatpush1.xpose.msra.mxu0 0.0
    %157 = vmatprep.subr.mxu0 0.0
    %158 = vmatpush1.xpose.msra.mxu0 0.0
    %159 = vmatprep.subr.mxu0 0.0
    %160 = vmatpush1.xpose.msra.mxu0 0.0
    %161 = vmatprep.subr.mxu0 0.0
    %162 = vmatpush1.xpose.msra.mxu0 0.0
    %163 = vmatprep.subr.mxu0 0.0
    %164 = vmatpush1.xpose.msra.mxu0 0.0
    %165 = vmatprep.subr.mxu0 0.0
    %166 = vmatpush1.xpose.msra.mxu0 0.0
    %167 = vmatprep.subr.mxu0 0.0
    %168 = vmatpush1.xpose.msra.mxu0 0.0
    %169 = vmatprep.subr.mxu0 0.0
    %170 = vmatpush1.xpose.msra.mxu0 0.0
    %171 = vmatprep.mubr.f32.mxu0 0.0
    %172 = vmatmul.mubr.f32.gmra.mrb[0].mxu0 %v102
    %v173 = vpop.f32.mrb[0].mxu0
    %v174 = vadd.f32 0.0, %v173
    %v175 = vpop.f32.mrb[0].mxu0
    %176 = vdwg.mxu0
    %v177 = vmul.f32 %v98, 0.25
    %v178 = vmul.f32 %v174, 0.25
    %vm179 = vcmask 60416
    %v180 = vsel %vm179, %v177, -inf
    %181 = vmax.xlane.f32.xlu0 %v180
    %v182 = vpop.xlane.xlu0 %181
    %v183 = vsel %vm179, %v178, -inf
    %184 = vmax.xlane.f32.xlu0 %v183
    %v185 = vpop.xlane.xlu0 %184
    %v186 = vsub.f32 %v177, %v182
    %v187 = vsub.f32 %v178, %v185
    %v188 = vmul.f32 %v186, 1.442695
    %v189 = vpow.pop %v188
    %v190 = vmul.f32 %v187, 1.442695
    %v191 = vpow.pop %v190
    %v192 = vsel %vm179, %v189, 0.0
    %193 = vadd.xlane.f32.xlu0 %v192
    %v194 = vpop.xlane.xlu0 %193
    %v195 = vsel %vm179, %v191, 0.0
    %196 = vadd.xlane.f32.xlu0 %v195
    %v197 = vpop.xlane.xlu0 %196
    %v198 = vld [vmem:[%s3] sm:$0xf]
    %v199 = vld [vmem:[%s3 + $0x4] sm:$0xf]
    %vm200 = vcmp.ge.u32.totalorder %v198, 1717986918
    %vm201 = vcmp.ge.u32.totalorder %v199, 1717986918
    %v202 = vsel %vm200, %v189, 0.0
    %v203 = vsel %vm201, %v191, 0.0
    %v204 = vrcp.pop %v194
    %v205 = vmul.f32 1.6666666, %v204
    %v206 = vrcp.pop %v197
    %v207 = vmul.f32 1.6666666, %v206
    %v209 = vsel %vm24, %v202, 0
    %211 = vmatprep.subr.mxu0 0.0
    %212 = vmatpush1.msra.mxu0 %v22
    %213 = vmatprep.subr.mxu0 0.0
    %214 = vmatpush1.msra.mxu0 0.0
    %215 = vmatprep.subr.mxu0 0.0
    %216 = vmatpush1.msra.mxu0 0.0
    %217 = vmatprep.subr.mxu0 0.0
    %218 = vmatpush1.msra.mxu0 0.0
    %219 = vmatprep.subr.mxu0 0.0
    %220 = vmatpush1.msra.mxu0 0.0
    %221 = vmatprep.subr.mxu0 0.0
    %222 = vmatpush1.msra.mxu0 0.0
    %223 = vmatprep.subr.mxu0 0.0
    %224 = vmatpush1.msra.mxu0 0.0
    %225 = vmatprep.subr.mxu0 0.0
    %226 = vmatpush1.msra.mxu0 0.0
    %227 = vmatprep.subr.mxu0 0.0
    %228 = vmatpush1.msra.mxu0 0.0
    %229 = vmatprep.subr.mxu0 0.0
    %230 = vmatpush1.msra.mxu0 0.0
    %231 = vmatprep.subr.mxu0 0.0
    %232 = vmatpush1.msra.mxu0 0.0
    %233 = vmatprep.subr.mxu0 0.0
    %234 = vmatpush1.msra.mxu0 0.0
    %235 = vmatprep.subr.mxu0 0.0
    %236 = vmatpush1.msra.mxu0 0.0
    %237 = vmatprep.subr.mxu0 0.0
    %238 = vmatpush1.msra.mxu0 0.0
    %239 = vmatprep.subr.mxu0 0.0
    %240 = vmatpush1.msra.mxu0 0.0
    %241 = vmatprep.subr.mxu0 0.0
    %242 = vmatpush1.msra.mxu0 0.0
    %243 = vmatprep.subr.mxu0 0.0
    %244 = vmatpush1.msra.mxu0 0.0
    %245 = vmatprep.subr.mxu0 0.0
    %246 = vmatpush1.msra.mxu0 0.0
    %247 = vmatprep.subr.mxu0 0.0
    %248 = vmatpush1.msra.mxu0 0.0
    %249 = vmatprep.subr.mxu0 0.0
    %250 = vmatpush1.msra.mxu0 0.0
    %251 = vmatprep.subr.mxu0 0.0
    %252 = vmatpush1.msra.mxu0 0.0
    %253 = vmatprep.subr.mxu0 0.0
    %254 = vmatpush1.msra.mxu0 0.0
    %255 = vmatprep.subr.mxu0 0.0
    %256 = vmatpush1.msra.mxu0 0.0
    %257 = vmatprep.subr.mxu0 0.0
    %258 = vmatpush1.msra.mxu0 0.0
    %259 = vmatprep.subr.mxu0 0.0
    %260 = vmatpush1.msra.mxu0 0.0
    %261 = vmatprep.subr.mxu0 0.0
    %262 = vmatpush1.msra.mxu0 0.0
    %263 = vmatprep.subr.mxu0 0.0
    %264 = vmatpush1.msra.mxu0 0.0
    %265 = vmatprep.subr.mxu0 0.0
    %266 = vmatpush1.msra.mxu0 0.0
    %267 = vmatprep.subr.mxu0 0.0
    %268 = vmatpush1.msra.mxu0 0.0
    %269 = vmatprep.subr.mxu0 0.0
    %270 = vmatpush1.msra.mxu0 0.0
    %271 = vmatprep.subr.mxu0 0.0
    %272 = vmatpush1.msra.mxu0 0.0
    %273 = vmatprep.subr.mxu0 0.0
    %274 = vmatpush1.msra.mxu0 0.0
    %275 = vmatprep.mubr.f32.mxu0 0.0
    %276 = vmatmul.mubr.f32.gmra.mrb[0].mxu0 %v209
    %v277 = vpop.f32.mrb[0].mxu0
    %v278 = vadd.f32 0.0, %v277
    %v279 = vpop.f32.mrb[0].mxu0
    %280 = vdwg.mxu0
    %v282 = vsel %vm24, %v203, 0
    %284 = vmatprep.subr.mxu0 0.0
    %285 = vmatpush1.msra.mxu0 %v23
    %286 = vmatprep.subr.mxu0 0.0
    %287 = vmatpush1.msra.mxu0 0.0
    %288 = vmatprep.subr.mxu0 0.0
    %289 = vmatpush1.msra.mxu0 0.0
    %290 = vmatprep.subr.mxu0 0.0
    %291 = vmatpush1.msra.mxu0 0.0
    %292 = vmatprep.subr.mxu0 0.0
    %293 = vmatpush1.msra.mxu0 0.0
    %294 = vmatprep.subr.mxu0 0.0
    %295 = vmatpush1.msra.mxu0 0.0
    %296 = vmatprep.subr.mxu0 0.0
    %297 = vmatpush1.msra.mxu0 0.0
    %298 = vmatprep.subr.mxu0 0.0
    %299 = vmatpush1.msra.mxu0 0.0
    %300 = vmatprep.subr.mxu0 0.0
    %301 = vmatpush1.msra.mxu0 0.0
    %302 = vmatprep.subr.mxu0 0.0
    %303 = vmatpush1.msra.mxu0 0.0
    %304 = vmatprep.subr.mxu0 0.0
    %305 = vmatpush1.msra.mxu0 0.0
    %306 = vmatprep.subr.mxu0 0.0
    %307 = vmatpush1.msra.mxu0 0.0
    %308 = vmatprep.subr.mxu0 0.0
    %309 = vmatpush1.msra.mxu0 0.0
    %310 = vmatprep.subr.mxu0 0.0
    %311 = vmatpush1.msra.mxu0 0.0
    %312 = vmatprep.subr.mxu0 0.0
    %313 = vmatpush1.msra.mxu0 0.0
    %314 = vmatprep.subr.mxu0 0.0
    %315 = vmatpush1.msra.mxu0 0.0
    %316 = vmatprep.subr.mxu0 0.0
    %317 = vmatpush1.msra.mxu0 0.0
    %318 = vmatprep.subr.mxu0 0.0
    %319 = vmatpush1.msra.mxu0 0.0
    %320 = vmatprep.subr.mxu0 0.0
    %321 = vmatpush1.msra.mxu0 0.0
    %322 = vmatprep.subr.mxu0 0.0
    %323 = vmatpush1.msra.mxu0 0.0
    %324 = vmatprep.subr.mxu0 0.0
    %325 = vmatpush1.msra.mxu0 0.0
    %326 = vmatprep.subr.mxu0 0.0
    %327 = vmatpush1.msra.mxu0 0.0
    %328 = vmatprep.subr.mxu0 0.0
    %329 = vmatpush1.msra.mxu0 0.0
    %330 = vmatprep.subr.mxu0 0.0
    %331 = vmatpush1.msra.mxu0 0.0
    %332 = vmatprep.subr.mxu0 0.0
    %333 = vmatpush1.msra.mxu0 0.0
    %334 = vmatprep.subr.mxu0 0.0
    %335 = vmatpush1.msra.mxu0 0.0
    %336 = vmatprep.subr.mxu0 0.0
    %337 = vmatpush1.msra.mxu0 0.0
    %338 = vmatprep.subr.mxu0 0.0
    %339 = vmatpush1.msra.mxu0 0.0
    %340 = vmatprep.subr.mxu0 0.0
    %341 = vmatpush1.msra.mxu0 0.0
    %342 = vmatprep.subr.mxu0 0.0
    %343 = vmatpush1.msra.mxu0 0.0
    %344 = vmatprep.subr.mxu0 0.0
    %345 = vmatpush1.msra.mxu0 0.0
    %346 = vmatprep.subr.mxu0 0.0
    %347 = vmatpush1.msra.mxu0 0.0
    %348 = vmatprep.mubr.f32.mxu0 0.0
    %349 = vmatmul.mubr.f32.gmra.mrb[0].mxu0 %v282
    %v350 = vpop.f32.mrb[0].mxu0
    %v351 = vadd.f32 0.0, %v350
    %v352 = vpop.f32.mrb[0].mxu0
    %353 = vdwg.mxu0
    %v354 = vmul.f32 %v278, %v205
    %v355 = vmul.f32 %v351, %v207
    %vm356 = vcmask 27648
    %357 = vst.msk [vmem:[#allocation2] sm:$0xf] %vm356, %v354
    %358 = vst.msk [vmem:[#allocation2 + $0x4] sm:$0xf] %vm356, %v355
    // Predicated region
    $region18: #{tpu_custom_call.1} parent=1 // pred_check
      _
    $region19: #{tpu_custom_call.1} parent=1 // pred_check_branch
      %360 = sbr.rel (0) target = $region21
    $region20: #{tpu_custom_call.1} parent=1 // pred_region
      %s362 = ssub.s32 128, 128
      %363 = vsyncadd [#allocation3], %s362
      %s364 = sshll.u32 [#allocation2], 4
      %s365 = int_to_ptr.vmem [resolvable:$true] %s364
      %370 = dma.vmem_to_hbm [thread:$0]  %s365, 128, %s4, [#allocation3], 64, 64, 4
    $region21: #{tpu_custom_call.1} parent=1 // pred_fallthru
      _
    // Predicated region
    $region22: #{tpu_custom_call.1} parent=1 // pred_check
      _
    $region23: #{tpu_custom_call.1} parent=1 // pred_check_branch
      %372 = sbr.rel (0) target = $region25
    $region24: #{tpu_custom_call.1} parent=1 // pred_region
      %373 = dma.done [#allocation3], 128
    $region25: #{tpu_custom_call.1} parent=1 // pred_fallthru
      _
    %374 = vsyncpa [#allocation3], 1

</llo_original>
